<compile_context>
chip_gen: v6e
topology: v6e:2x2x1
jax: 0.10.0
libtpu: 0.0.40
codegen_flags: <defaults>
</compile_context>

<pallas_src>
import functools

import jax
import jax.numpy as jnp
import numpy as np
from jax.experimental import pallas as pl
from jax.experimental.pallas import tpu as pltpu


# ------------------------------ Pallas kernel -------------------------------

def _pmodel_kernel(sig_ref, s0_ref, traj_ref, con_ref, *, t_pad):
    """Full time recurrence for one lane tile.

    sig_ref : SMEM (4,)               f32 -> [ZM, ZU, VM, VU]
    s0_ref  : VMEM (4, tile)          f32 -> initial state rows [x0, x1, h0, h1]
    traj_ref: VMEM (t_pad*4, tile)    f32 -> rows [4t:4t+4] = state at step t
    con_ref : VMEM (t_pad, tile)      f32 -> row t = controller output at step t
    """
    # Hoisted scalar reads (once per kernel invocation, not per step).
    zm = sig_ref[0]
    zu = sig_ref[1]
    vm = sig_ref[2]
    vu = sig_ref[3]

    # State carried as SSA/vreg values (no VMEM scratch carry).
    x0 = s0_ref[0:1, :]
    x1 = s0_ref[1:2, :]
    h0 = s0_ref[2:3, :]
    h1 = s0_ref[3:4, :]

    # Fully unrolled time loop (t_pad <= ~64 typical; default num_steps=50).
    # TODO(synk): for very large num_steps switch to an in-kernel fori_loop carry
    # to bound trace/compile size.
    n_groups = t_pad // 8
    for g in range(n_groups):
        con_rows = []
        for p in range(4):                       # 4 pairs of steps per group of 8
            rows = []
            for _ in range(2):                   # 2 steps -> one dense 8-row store
                con = zm * h0 + zu * h1          # P[1:2, 2:] @ state[2:] (pre-update)
                rows += [x0, x1, h0, h1]
                con_rows.append(con)
                # state <- P @ state via the fixed structure of P (pure VPU):
                #   row0 = x0 + x1, row1 = x1 + con, row2 = x0 + x1, row3 = VM*h0 + VU*h1
                x01 = x0 + x1
                x0, x1, h0, h1 = x01, x1 + con, x01, vm * h0 + vu * h1
            # Dense (8, tile) store: 2 steps x 4 state rows, sublane-aligned.
            traj_ref[pl.ds((g * 4 + p) * 8, 8), :] = jnp.concatenate(rows, axis=0)
        # Dense (8, tile) store: 8 controller rows, sublane-aligned.
        con_ref[pl.ds(g * 8, 8), :] = jnp.concatenate(con_rows, axis=0)


# ------------------------------ Python wrapper -------------------------------

def _choose_lane_tile(n):
    """Lane-dense tile: multiple of 128, capped to keep vreg pressure low."""
    n_128 = max(128, ((n + 127) // 128) * 128)
    return min(n_128, 256)


def p_model_eff_forward(x0, x1, h0, h1, params, num_steps=50):
    """teacher=None path of P_Model_eff.forward, computed in one Pallas kernel.

    params: dict with scalar entries 'ZM', 'ZU', 'VM', 'VU'.
    Returns (traj, all_con) with shapes (num_steps, 4, N) and (num_steps, 1, N).
    """
    # TODO(synk): the teacher/white_noise branch (per-step host-side injection of
    # x0[n,:], x1[n,:] into the teacher & student states) is a training utility with
    # host-driven data dependence and is not implemented as a kernel.
    x0 = jnp.asarray(x0, jnp.float32)
    x1 = jnp.asarray(x1, jnp.float32)
    h0 = jnp.asarray(h0, jnp.float32)
    h1 = jnp.asarray(h1, jnp.float32)

    state0 = jnp.stack([x0, x1, h0, h1], axis=0)            # (4, N)
    n = state0.shape[1]

    t_steps = int(num_steps)
    t_pad = max(8, ((t_steps + 7) // 8) * 8)                 # multiple of 8 for dense stores

    tile = _choose_lane_tile(n)
    n_pad = ((n + tile - 1) // tile) * tile
    state0_p = jnp.pad(state0, ((0, 0), (0, n_pad - n)))
    n_tiles = n_pad // tile

    sig = jnp.stack([jnp.asarray(params["ZM"], jnp.float32),
                     jnp.asarray(params["ZU"], jnp.float32),
                     jnp.asarray(params["VM"], jnp.float32),
                     jnp.asarray(params["VU"], jnp.float32)])  # (4,)

    out_shape = (
        jax.ShapeDtypeStruct((t_pad * 4, n_pad), jnp.float32),   # traj slab
        jax.ShapeDtypeStruct((t_pad, n_pad), jnp.float32),       # all_con slab
    )

    grid_spec = pltpu.PrefetchScalarGridSpec(
        num_scalar_prefetch=0,
        grid=(n_tiles,),
        in_specs=[
            pl.BlockSpec(memory_space=pltpu.MemorySpace.SMEM),        # sigmas (4,)
            pl.BlockSpec((4, tile), lambda j: (0, j)),                # initial state tile
        ],
        out_specs=[
            pl.BlockSpec((t_pad * 4, tile), lambda j: (0, j)),        # traj slab tile
            pl.BlockSpec((t_pad, tile), lambda j: (0, j)),            # all_con slab tile
        ],
    )

    cost = pl.CostEstimate(
        flops=8 * t_pad * n_pad,
        transcendentals=0,
        bytes_accessed=4 * (t_pad * 5 * n_pad + 4 * n_pad + 4),
    )

    traj_slab, con_slab = pl.pallas_call(
        functools.partial(_pmodel_kernel, t_pad=t_pad),
        out_shape=out_shape,
        grid_spec=grid_spec,
        compiler_params=pltpu.CompilerParams(
            dimension_semantics=("parallel",)),   # lane tiles are independent
        cost_estimate=cost,
    )(sig, state0_p)

    traj = traj_slab.reshape(t_pad, 4, n_pad)[:t_steps, :, :n]
    all_con = con_slab[:t_steps, :n][:, None, :]
    return traj, all_con


# ------------------------------ Reference impl -------------------------------

def p_model_eff_ref(x0, x1, h0, h1, params, num_steps=50):
    """Pure-JAX mirror of the PyTorch forward (teacher=None)."""
    P = jnp.array([[1.0, 1.0, 0.0, 0.0],
                   [0.0, 1.0, 0.0, 0.0],
                   [1.0, 1.0, 0.0, 0.0],
                   [0.0, 0.0, 0.0, 0.0]], jnp.float32)
    P = P.at[1, 2].set(jnp.float32(params["ZM"])).at[1, 3].set(jnp.float32(params["ZU"]))
    P = P.at[3, 2].set(jnp.float32(params["VM"])).at[3, 3].set(jnp.float32(params["VU"]))
    state = jnp.stack([x0, x1, h0, h1]).astype(jnp.float32)
    traj, cons = [], []
    for _ in range(num_steps):
        cons.append(P[1:2, 2:] @ state[2:])
        traj.append(state)
        state = P @ state
    return jnp.stack(traj), jnp.stack(cons)


# ----------------------------------- main ------------------------------------

if __name__ == "__main__":
    key = jax.random.PRNGKey(0)
    k0, k1, k2, k3 = jax.random.split(key, 4)

    # ---- Test 1: small vectors, non-trivial sigmas ----
    n = 16
    num_steps = 20
    x0 = jax.random.normal(k0, (n,), jnp.float32)
    x1 = jax.random.normal(k1, (n,), jnp.float32)
    h0 = jax.random.normal(k2, (n,), jnp.float32)
    h1 = jax.random.normal(k3, (n,), jnp.float32)
    params = {
        "ZM": jnp.float32(0.10),
        "ZU": jnp.float32(-0.05),
        "VM": jnp.float32(0.20),
        "VU": jnp.float32(0.15),
    }

    traj, all_con = p_model_eff_forward(x0, x1, h0, h1, params, num_steps=num_steps)
    jax.block_until_ready((traj, all_con))
    assert traj.shape == (num_steps, 4, n)
    assert all_con.shape == (num_steps, 1, n)

    traj_r, con_r = p_model_eff_ref(x0, x1, h0, h1, params, num_steps=num_steps)
    np.testing.assert_allclose(np.asarray(traj), np.asarray(traj_r), rtol=1e-4, atol=1e-4)
    np.testing.assert_allclose(np.asarray(all_con), np.asarray(con_r), rtol=1e-4, atol=1e-4)

    # ---- Test 2: default-constructed module (all sigmas = 0.0) ----
    zero_params = {k: jnp.float32(0.0) for k in ("ZM", "ZU", "VM", "VU")}
    traj0, con0 = p_model_eff_forward(x0, x1, h0, h1, zero_params, num_steps=8)
    jax.block_until_ready((traj0, con0))
    traj0_r, con0_r = p_model_eff_ref(x0, x1, h0, h1, zero_params, num_steps=8)
    np.testing.assert_allclose(np.asarray(traj0), np.asarray(traj0_r), rtol=1e-5, atol=1e-5)
    np.testing.assert_allclose(np.asarray(con0), np.asarray(con0_r), rtol=1e-5, atol=1e-5)

    # ---- Test 3: N > lane tile (multi-tile parallel grid) and T not multiple of 8 ----
    n2, num_steps2 = 300, 13
    kk = jax.random.split(jax.random.PRNGKey(1), 4)
    xs = [jax.random.normal(kk[i], (n2,), jnp.float32) for i in range(4)]
    traj2, con2 = p_model_eff_forward(*xs, params, num_steps=num_steps2)
    jax.block_until_ready((traj2, con2))
    assert traj2.shape == (num_steps2, 4, n2)
    assert con2.shape == (num_steps2, 1, n2)
    traj2_r, con2_r = p_model_eff_ref(*xs, params, num_steps=num_steps2)
    np.testing.assert_allclose(np.asarray(traj2), np.asarray(traj2_r), rtol=1e-4, atol=1e-4)
    np.testing.assert_allclose(np.asarray(con2), np.asarray(con2_r), rtol=1e-4, atol=1e-4)

    print("KERNEL_OK")
</pallas_src>

<mosaic_0001>
module attributes {stable_mosaic.version = 11 : i64} {
  func.func @_pmodel_kernel(%arg0: i32, %arg1: memref<4xf32, #tpu.memory_space<smem>>, %arg2: memref<4x128xf32, #tpu.memory_space<vmem>>, %arg3: memref<96x128xf32, #tpu.memory_space<vmem>>, %arg4: memref<24x128xf32, #tpu.memory_space<vmem>>) attributes {dimension_semantics = [#tpu.dimension_semantics<parallel>], iteration_bounds = array<i64: 1>, scalar_prefetch = 0 : i64, scratch_operands = 0 : i64, tpu.core_type = #tpu.core_type<tc>, window_params = [{transform_indices = @transform_0, window_bounds = array<i64: 4>}, {transform_indices = @transform_1, window_bounds = array<i64: 4, 128>}, {transform_indices = @transform_2, window_bounds = array<i64: 96, 128>}, {transform_indices = @transform_3, window_bounds = array<i64: 24, 128>}]} {
    %c0 = arith.constant 0 : index
    %0 = memref.load %arg1[%c0] : memref<4xf32, #tpu.memory_space<smem>>
    %c1 = arith.constant 1 : index
    %1 = memref.load %arg1[%c1] : memref<4xf32, #tpu.memory_space<smem>>
    %c2 = arith.constant 2 : index
    %2 = memref.load %arg1[%c2] : memref<4xf32, #tpu.memory_space<smem>>
    %c3 = arith.constant 3 : index
    %3 = memref.load %arg1[%c3] : memref<4xf32, #tpu.memory_space<smem>>
    %c0_0 = arith.constant 0 : index
    %c0_1 = arith.constant 0 : index
    %4 = vector.load %arg2[%c0_0, %c0_1] : memref<4x128xf32, #tpu.memory_space<vmem>>, vector<1x128xf32>
    %c1_2 = arith.constant 1 : index
    %c0_3 = arith.constant 0 : index
    %5 = vector.load %arg2[%c1_2, %c0_3] : memref<4x128xf32, #tpu.memory_space<vmem>>, vector<1x128xf32>
    %c2_4 = arith.constant 2 : index
    %c0_5 = arith.constant 0 : index
    %6 = vector.load %arg2[%c2_4, %c0_5] : memref<4x128xf32, #tpu.memory_space<vmem>>, vector<1x128xf32>
    %c3_6 = arith.constant 3 : index
    %c0_7 = arith.constant 0 : index
    %7 = vector.load %arg2[%c3_6, %c0_7] : memref<4x128xf32, #tpu.memory_space<vmem>>, vector<1x128xf32>
    %8 = vector.broadcast %0 : f32 to vector<1x128xf32>
    %9 = arith.mulf %8, %6 : vector<1x128xf32>
    %10 = vector.broadcast %1 : f32 to vector<1x128xf32>
    %11 = arith.mulf %10, %7 : vector<1x128xf32>
    %12 = arith.addf %9, %11 : vector<1x128xf32>
    %13 = arith.addf %4, %5 : vector<1x128xf32>
    %14 = arith.addf %5, %12 : vector<1x128xf32>
    %15 = vector.broadcast %2 : f32 to vector<1x128xf32>
    %16 = arith.mulf %15, %6 : vector<1x128xf32>
    %17 = vector.broadcast %3 : f32 to vector<1x128xf32>
    %18 = arith.mulf %17, %7 : vector<1x128xf32>
    %19 = arith.addf %16, %18 : vector<1x128xf32>
    %20 = vector.broadcast %0 : f32 to vector<1x128xf32>
    %21 = arith.mulf %20, %13 : vector<1x128xf32>
    %22 = vector.broadcast %1 : f32 to vector<1x128xf32>
    %23 = arith.mulf %22, %19 : vector<1x128xf32>
    %24 = arith.addf %21, %23 : vector<1x128xf32>
    %25 = arith.addf %13, %14 : vector<1x128xf32>
    %26 = arith.addf %14, %24 : vector<1x128xf32>
    %27 = vector.broadcast %2 : f32 to vector<1x128xf32>
    %28 = arith.mulf %27, %13 : vector<1x128xf32>
    %29 = vector.broadcast %3 : f32 to vector<1x128xf32>
    %30 = arith.mulf %29, %19 : vector<1x128xf32>
    %31 = arith.addf %28, %30 : vector<1x128xf32>
    %32 = tpu.concatenate %4, %5, %6, %7, %13, %14, %13, %19 in 0 : vector<1x128xf32>, vector<1x128xf32>, vector<1x128xf32>, vector<1x128xf32>, vector<1x128xf32>, vector<1x128xf32>, vector<1x128xf32>, vector<1x128xf32> -> vector<8x128xf32>
    %c0_8 = arith.constant 0 : index
    %c0_9 = arith.constant 0 : index
    %33 = vector.load %arg3[%c0_8, %c0_9] : memref<96x128xf32, #tpu.memory_space<vmem>>, vector<8x128xf32>
    tpu.vector_store %arg3[%c0_8, %c0_9], %32 {strides = array<i32>} : memref<96x128xf32, #tpu.memory_space<vmem>>, vector<8x128xf32>,
    %34 = vector.broadcast %0 : f32 to vector<1x128xf32>
    %35 = arith.mulf %34, %25 : vector<1x128xf32>
    %36 = vector.broadcast %1 : f32 to vector<1x128xf32>
    %37 = arith.mulf %36, %31 : vector<1x128xf32>
    %38 = arith.addf %35, %37 : vector<1x128xf32>
    %39 = arith.addf %25, %26 : vector<1x128xf32>
    %40 = arith.addf %26, %38 : vector<1x128xf32>
    %41 = vector.broadcast %2 : f32 to vector<1x128xf32>
    %42 = arith.mulf %41, %25 : vector<1x128xf32>
    %43 = vector.broadcast %3 : f32 to vector<1x128xf32>
    %44 = arith.mulf %43, %31 : vector<1x128xf32>
    %45 = arith.addf %42, %44 : vector<1x128xf32>
    %46 = vector.broadcast %0 : f32 to vector<1x128xf32>
    %47 = arith.mulf %46, %39 : vector<1x128xf32>
    %48 = vector.broadcast %1 : f32 to vector<1x128xf32>
    %49 = arith.mulf %48, %45 : vector<1x128xf32>
    %50 = arith.addf %47, %49 : vector<1x128xf32>
    %51 = arith.addf %39, %40 : vector<1x128xf32>
    %52 = arith.addf %40, %50 : vector<1x128xf32>
    %53 = vector.broadcast %2 : f32 to vector<1x128xf32>
    %54 = arith.mulf %53, %39 : vector<1x128xf32>
    %55 = vector.broadcast %3 : f32 to vector<1x128xf32>
    %56 = arith.mulf %55, %45 : vector<1x128xf32>
    %57 = arith.addf %54, %56 : vector<1x128xf32>
    %58 = tpu.concatenate %25, %26, %25, %31, %39, %40, %39, %45 in 0 : vector<1x128xf32>, vector<1x128xf32>, vector<1x128xf32>, vector<1x128xf32>, vector<1x128xf32>, vector<1x128xf32>, vector<1x128xf32>, vector<1x128xf32> -> vector<8x128xf32>
    %c8 = arith.constant 8 : index
    %c0_10 = arith.constant 0 : index
    %59 = vector.load %arg3[%c8, %c0_10] : memref<96x128xf32, #tpu.memory_space<vmem>>, vector<8x128xf32>
    tpu.vector_store %arg3[%c8, %c0_10], %58 {strides = array<i32>} : memref<96x128xf32, #tpu.memory_space<vmem>>, vector<8x128xf32>,
    %60 = vector.broadcast %0 : f32 to vector<1x128xf32>
    %61 = arith.mulf %60, %51 : vector<1x128xf32>
    %62 = vector.broadcast %1 : f32 to vector<1x128xf32>
    %63 = arith.mulf %62, %57 : vector<1x128xf32>
    %64 = arith.addf %61, %63 : vector<1x128xf32>
    %65 = arith.addf %51, %52 : vector<1x128xf32>
    %66 = arith.addf %52, %64 : vector<1x128xf32>
    %67 = vector.broadcast %2 : f32 to vector<1x128xf32>
    %68 = arith.mulf %67, %51 : vector<1x128xf32>
    %69 = vector.broadcast %3 : f32 to vector<1x128xf32>
    %70 = arith.mulf %69, %57 : vector<1x128xf32>
    %71 = arith.addf %68, %70 : vector<1x128xf32>
    %72 = vector.broadcast %0 : f32 to vector<1x128xf32>
    %73 = arith.mulf %72, %65 : vector<1x128xf32>
    %74 = vector.broadcast %1 : f32 to vector<1x128xf32>
    %75 = arith.mulf %74, %71 : vector<1x128xf32>
    %76 = arith.addf %73, %75 : vector<1x128xf32>
    %77 = arith.addf %65, %66 : vector<1x128xf32>
    %78 = arith.addf %66, %76 : vector<1x128xf32>
    %79 = vector.broadcast %2 : f32 to vector<1x128xf32>
    %80 = arith.mulf %79, %65 : vector<1x128xf32>
    %81 = vector.broadcast %3 : f32 to vector<1x128xf32>
    %82 = arith.mulf %81, %71 : vector<1x128xf32>
    %83 = arith.addf %80, %82 : vector<1x128xf32>
    %84 = tpu.concatenate %51, %52, %51, %57, %65, %66, %65, %71 in 0 : vector<1x128xf32>, vector<1x128xf32>, vector<1x128xf32>, vector<1x128xf32>, vector<1x128xf32>, vector<1x128xf32>, vector<1x128xf32>, vector<1x128xf32> -> vector<8x128xf32>
    %c16 = arith.constant 16 : index
    %c0_11 = arith.constant 0 : index
    %85 = vector.load %arg3[%c16, %c0_11] : memref<96x128xf32, #tpu.memory_space<vmem>>, vector<8x128xf32>
    tpu.vector_store %arg3[%c16, %c0_11], %84 {strides = array<i32>} : memref<96x128xf32, #tpu.memory_space<vmem>>, vector<8x128xf32>,
    %86 = vector.broadcast %0 : f32 to vector<1x128xf32>
    %87 = arith.mulf %86, %77 : vector<1x128xf32>
    %88 = vector.broadcast %1 : f32 to vector<1x128xf32>
    %89 = arith.mulf %88, %83 : vector<1x128xf32>
    %90 = arith.addf %87, %89 : vector<1x128xf32>
    %91 = arith.addf %77, %78 : vector<1x128xf32>
    %92 = arith.addf %78, %90 : vector<1x128xf32>
    %93 = vector.broadcast %2 : f32 to vector<1x128xf32>
    %94 = arith.mulf %93, %77 : vector<1x128xf32>
    %95 = vector.broadcast %3 : f32 to vector<1x128xf32>
    %96 = arith.mulf %95, %83 : vector<1x128xf32>
    %97 = arith.addf %94, %96 : vector<1x128xf32>
    %98 = vector.broadcast %0 : f32 to vector<1x128xf32>
    %99 = arith.mulf %98, %91 : vector<1x128xf32>
    %100 = vector.broadcast %1 : f32 to vector<1x128xf32>
    %101 = arith.mulf %100, %97 : vector<1x128xf32>
    %102 = arith.addf %99, %101 : vector<1x128xf32>
    %103 = arith.addf %91, %92 : vector<1x128xf32>
    %104 = arith.addf %92, %102 : vector<1x128xf32>
    %105 = vector.broadcast %2 : f32 to vector<1x128xf32>
    %106 = arith.mulf %105, %91 : vector<1x128xf32>
    %107 = vector.broadcast %3 : f32 to vector<1x128xf32>
    %108 = arith.mulf %107, %97 : vector<1x128xf32>
    %109 = arith.addf %106, %108 : vector<1x128xf32>
    %110 = tpu.concatenate %77, %78, %77, %83, %91, %92, %91, %97 in 0 : vector<1x128xf32>, vector<1x128xf32>, vector<1x128xf32>, vector<1x128xf32>, vector<1x128xf32>, vector<1x128xf32>, vector<1x128xf32>, vector<1x128xf32> -> vector<8x128xf32>
    %c24 = arith.constant 24 : index
    %c0_12 = arith.constant 0 : index
    %111 = vector.load %arg3[%c24, %c0_12] : memref<96x128xf32, #tpu.memory_space<vmem>>, vector<8x128xf32>
    tpu.vector_store %arg3[%c24, %c0_12], %110 {strides = array<i32>} : memref<96x128xf32, #tpu.memory_space<vmem>>, vector<8x128xf32>,
    %112 = tpu.concatenate %12, %24, %38, %50, %64, %76, %90, %102 in 0 : vector<1x128xf32>, vector<1x128xf32>, vector<1x128xf32>, vector<1x128xf32>, vector<1x128xf32>, vector<1x128xf32>, vector<1x128xf32>, vector<1x128xf32> -> vector<8x128xf32>
    %c0_13 = arith.constant 0 : index
    %c0_14 = arith.constant 0 : index
    %113 = vector.load %arg4[%c0_13, %c0_14] : memref<24x128xf32, #tpu.memory_space<vmem>>, vector<8x128xf32>
    tpu.vector_store %arg4[%c0_13, %c0_14], %112 {strides = array<i32>} : memref<24x128xf32, #tpu.memory_space<vmem>>, vector<8x128xf32>,
    %114 = vector.broadcast %0 : f32 to vector<1x128xf32>
    %115 = arith.mulf %114, %103 : vector<1x128xf32>
    %116 = vector.broadcast %1 : f32 to vector<1x128xf32>
    %117 = arith.mulf %116, %109 : vector<1x128xf32>
    %118 = arith.addf %115, %117 : vector<1x128xf32>
    %119 = arith.addf %103, %104 : vector<1x128xf32>
    %120 = arith.addf %104, %118 : vector<1x128xf32>
    %121 = vector.broadcast %2 : f32 to vector<1x128xf32>
    %122 = arith.mulf %121, %103 : vector<1x128xf32>
    %123 = vector.broadcast %3 : f32 to vector<1x128xf32>
    %124 = arith.mulf %123, %109 : vector<1x128xf32>
    %125 = arith.addf %122, %124 : vector<1x128xf32>
    %126 = vector.broadcast %0 : f32 to vector<1x128xf32>
    %127 = arith.mulf %126, %119 : vector<1x128xf32>
    %128 = vector.broadcast %1 : f32 to vector<1x128xf32>
    %129 = arith.mulf %128, %125 : vector<1x128xf32>
    %130 = arith.addf %127, %129 : vector<1x128xf32>
    %131 = arith.addf %119, %120 : vector<1x128xf32>
    %132 = arith.addf %120, %130 : vector<1x128xf32>
    %133 = vector.broadcast %2 : f32 to vector<1x128xf32>
    %134 = arith.mulf %133, %119 : vector<1x128xf32>
    %135 = vector.broadcast %3 : f32 to vector<1x128xf32>
    %136 = arith.mulf %135, %125 : vector<1x128xf32>
    %137 = arith.addf %134, %136 : vector<1x128xf32>
    %138 = tpu.concatenate %103, %104, %103, %109, %119, %120, %119, %125 in 0 : vector<1x128xf32>, vector<1x128xf32>, vector<1x128xf32>, vector<1x128xf32>, vector<1x128xf32>, vector<1x128xf32>, vector<1x128xf32>, vector<1x128xf32> -> vector<8x128xf32>
    %c32 = arith.constant 32 : index
    %c0_15 = arith.constant 0 : index
    %139 = vector.load %arg3[%c32, %c0_15] : memref<96x128xf32, #tpu.memory_space<vmem>>, vector<8x128xf32>
    tpu.vector_store %arg3[%c32, %c0_15], %138 {strides = array<i32>} : memref<96x128xf32, #tpu.memory_space<vmem>>, vector<8x128xf32>,
    %140 = vector.broadcast %0 : f32 to vector<1x128xf32>
    %141 = arith.mulf %140, %131 : vector<1x128xf32>
    %142 = vector.broadcast %1 : f32 to vector<1x128xf32>
    %143 = arith.mulf %142, %137 : vector<1x128xf32>
    %144 = arith.addf %141, %143 : vector<1x128xf32>
    %145 = arith.addf %131, %132 : vector<1x128xf32>
    %146 = arith.addf %132, %144 : vector<1x128xf32>
    %147 = vector.broadcast %2 : f32 to vector<1x128xf32>
    %148 = arith.mulf %147, %131 : vector<1x128xf32>
    %149 = vector.broadcast %3 : f32 to vector<1x128xf32>
    %150 = arith.mulf %149, %137 : vector<1x128xf32>
    %151 = arith.addf %148, %150 : vector<1x128xf32>
    %152 = vector.broadcast %0 : f32 to vector<1x128xf32>
    %153 = arith.mulf %152, %145 : vector<1x128xf32>
    %154 = vector.broadcast %1 : f32 to vector<1x128xf32>
    %155 = arith.mulf %154, %151 : vector<1x128xf32>
    %156 = arith.addf %153, %155 : vector<1x128xf32>
    %157 = arith.addf %145, %146 : vector<1x128xf32>
    %158 = arith.addf %146, %156 : vector<1x128xf32>
    %159 = vector.broadcast %2 : f32 to vector<1x128xf32>
    %160 = arith.mulf %159, %145 : vector<1x128xf32>
    %161 = vector.broadcast %3 : f32 to vector<1x128xf32>
    %162 = arith.mulf %161, %151 : vector<1x128xf32>
    %163 = arith.addf %160, %162 : vector<1x128xf32>
    %164 = tpu.concatenate %131, %132, %131, %137, %145, %146, %145, %151 in 0 : vector<1x128xf32>, vector<1x128xf32>, vector<1x128xf32>, vector<1x128xf32>, vector<1x128xf32>, vector<1x128xf32>, vector<1x128xf32>, vector<1x128xf32> -> vector<8x128xf32>
    %c40 = arith.constant 40 : index
    %c0_16 = arith.constant 0 : index
    %165 = vector.load %arg3[%c40, %c0_16] : memref<96x128xf32, #tpu.memory_space<vmem>>, vector<8x128xf32>
    tpu.vector_store %arg3[%c40, %c0_16], %164 {strides = array<i32>} : memref<96x128xf32, #tpu.memory_space<vmem>>, vector<8x128xf32>,
    %166 = vector.broadcast %0 : f32 to vector<1x128xf32>
    %167 = arith.mulf %166, %157 : vector<1x128xf32>
    %168 = vector.broadcast %1 : f32 to vector<1x128xf32>
    %169 = arith.mulf %168, %163 : vector<1x128xf32>
    %170 = arith.addf %167, %169 : vector<1x128xf32>
    %171 = arith.addf %157, %158 : vector<1x128xf32>
    %172 = arith.addf %158, %170 : vector<1x128xf32>
    %173 = vector.broadcast %2 : f32 to vector<1x128xf32>
    %174 = arith.mulf %173, %157 : vector<1x128xf32>
    %175 = vector.broadcast %3 : f32 to vector<1x128xf32>
    %176 = arith.mulf %175, %163 : vector<1x128xf32>
    %177 = arith.addf %174, %176 : vector<1x128xf32>
    %178 = vector.broadcast %0 : f32 to vector<1x128xf32>
    %179 = arith.mulf %178, %171 : vector<1x128xf32>
    %180 = vector.broadcast %1 : f32 to vector<1x128xf32>
    %181 = arith.mulf %180, %177 : vector<1x128xf32>
    %182 = arith.addf %179, %181 : vector<1x128xf32>
    %183 = arith.addf %171, %172 : vector<1x128xf32>
    %184 = arith.addf %172, %182 : vector<1x128xf32>
    %185 = vector.broadcast %2 : f32 to vector<1x128xf32>
    %186 = arith.mulf %185, %171 : vector<1x128xf32>
    %187 = vector.broadcast %3 : f32 to vector<1x128xf32>
    %188 = arith.mulf %187, %177 : vector<1x128xf32>
    %189 = arith.addf %186, %188 : vector<1x128xf32>
    %190 = tpu.concatenate %157, %158, %157, %163, %171, %172, %171, %177 in 0 : vector<1x128xf32>, vector<1x128xf32>, vector<1x128xf32>, vector<1x128xf32>, vector<1x128xf32>, vector<1x128xf32>, vector<1x128xf32>, vector<1x128xf32> -> vector<8x128xf32>
    %c48 = arith.constant 48 : index
    %c0_17 = arith.constant 0 : index
    %191 = vector.load %arg3[%c48, %c0_17] : memref<96x128xf32, #tpu.memory_space<vmem>>, vector<8x128xf32>
    tpu.vector_store %arg3[%c48, %c0_17], %190 {strides = array<i32>} : memref<96x128xf32, #tpu.memory_space<vmem>>, vector<8x128xf32>,
    %192 = vector.broadcast %0 : f32 to vector<1x128xf32>
    %193 = arith.mulf %192, %183 : vector<1x128xf32>
    %194 = vector.broadcast %1 : f32 to vector<1x128xf32>
    %195 = arith.mulf %194, %189 : vector<1x128xf32>
    %196 = arith.addf %193, %195 : vector<1x128xf32>
    %197 = arith.addf %183, %184 : vector<1x128xf32>
    %198 = arith.addf %184, %196 : vector<1x128xf32>
    %199 = vector.broadcast %2 : f32 to vector<1x128xf32>
    %200 = arith.mulf %199, %183 : vector<1x128xf32>
    %201 = vector.broadcast %3 : f32 to vector<1x128xf32>
    %202 = arith.mulf %201, %189 : vector<1x128xf32>
    %203 = arith.addf %200, %202 : vector<1x128xf32>
    %204 = vector.broadcast %0 : f32 to vector<1x128xf32>
    %205 = arith.mulf %204, %197 : vector<1x128xf32>
    %206 = vector.broadcast %1 : f32 to vector<1x128xf32>
    %207 = arith.mulf %206, %203 : vector<1x128xf32>
    %208 = arith.addf %205, %207 : vector<1x128xf32>
    %209 = arith.addf %197, %198 : vector<1x128xf32>
    %210 = arith.addf %198, %208 : vector<1x128xf32>
    %211 = vector.broadcast %2 : f32 to vector<1x128xf32>
    %212 = arith.mulf %211, %197 : vector<1x128xf32>
    %213 = vector.broadcast %3 : f32 to vector<1x128xf32>
    %214 = arith.mulf %213, %203 : vector<1x128xf32>
    %215 = arith.addf %212, %214 : vector<1x128xf32>
    %216 = tpu.concatenate %183, %184, %183, %189, %197, %198, %197, %203 in 0 : vector<1x128xf32>, vector<1x128xf32>, vector<1x128xf32>, vector<1x128xf32>, vector<1x128xf32>, vector<1x128xf32>, vector<1x128xf32>, vector<1x128xf32> -> vector<8x128xf32>
    %c56 = arith.constant 56 : index
    %c0_18 = arith.constant 0 : index
    %217 = vector.load %arg3[%c56, %c0_18] : memref<96x128xf32, #tpu.memory_space<vmem>>, vector<8x128xf32>
    tpu.vector_store %arg3[%c56, %c0_18], %216 {strides = array<i32>} : memref<96x128xf32, #tpu.memory_space<vmem>>, vector<8x128xf32>,
    %218 = tpu.concatenate %118, %130, %144, %156, %170, %182, %196, %208 in 0 : vector<1x128xf32>, vector<1x128xf32>, vector<1x128xf32>, vector<1x128xf32>, vector<1x128xf32>, vector<1x128xf32>, vector<1x128xf32>, vector<1x128xf32> -> vector<8x128xf32>
    %c8_19 = arith.constant 8 : index
    %c0_20 = arith.constant 0 : index
    %219 = vector.load %arg4[%c8_19, %c0_20] : memref<24x128xf32, #tpu.memory_space<vmem>>, vector<8x128xf32>
    tpu.vector_store %arg4[%c8_19, %c0_20], %218 {strides = array<i32>} : memref<24x128xf32, #tpu.memory_space<vmem>>, vector<8x128xf32>,
    %220 = vector.broadcast %0 : f32 to vector<1x128xf32>
    %221 = arith.mulf %220, %209 : vector<1x128xf32>
    %222 = vector.broadcast %1 : f32 to vector<1x128xf32>
    %223 = arith.mulf %222, %215 : vector<1x128xf32>
    %224 = arith.addf %221, %223 : vector<1x128xf32>
    %225 = arith.addf %209, %210 : vector<1x128xf32>
    %226 = arith.addf %210, %224 : vector<1x128xf32>
    %227 = vector.broadcast %2 : f32 to vector<1x128xf32>
    %228 = arith.mulf %227, %209 : vector<1x128xf32>
    %229 = vector.broadcast %3 : f32 to vector<1x128xf32>
    %230 = arith.mulf %229, %215 : vector<1x128xf32>
    %231 = arith.addf %228, %230 : vector<1x128xf32>
    %232 = vector.broadcast %0 : f32 to vector<1x128xf32>
    %233 = arith.mulf %232, %225 : vector<1x128xf32>
    %234 = vector.broadcast %1 : f32 to vector<1x128xf32>
    %235 = arith.mulf %234, %231 : vector<1x128xf32>
    %236 = arith.addf %233, %235 : vector<1x128xf32>
    %237 = arith.addf %225, %226 : vector<1x128xf32>
    %238 = arith.addf %226, %236 : vector<1x128xf32>
    %239 = vector.broadcast %2 : f32 to vector<1x128xf32>
    %240 = arith.mulf %239, %225 : vector<1x128xf32>
    %241 = vector.broadcast %3 : f32 to vector<1x128xf32>
    %242 = arith.mulf %241, %231 : vector<1x128xf32>
    %243 = arith.addf %240, %242 : vector<1x128xf32>
    %244 = tpu.concatenate %209, %210, %209, %215, %225, %226, %225, %231 in 0 : vector<1x128xf32>, vector<1x128xf32>, vector<1x128xf32>, vector<1x128xf32>, vector<1x128xf32>, vector<1x128xf32>, vector<1x128xf32>, vector<1x128xf32> -> vector<8x128xf32>
    %c64 = arith.constant 64 : index
    %c0_21 = arith.constant 0 : index
    %245 = vector.load %arg3[%c64, %c0_21] : memref<96x128xf32, #tpu.memory_space<vmem>>, vector<8x128xf32>
    tpu.vector_store %arg3[%c64, %c0_21], %244 {strides = array<i32>} : memref<96x128xf32, #tpu.memory_space<vmem>>, vector<8x128xf32>,
    %246 = vector.broadcast %0 : f32 to vector<1x128xf32>
    %247 = arith.mulf %246, %237 : vector<1x128xf32>
    %248 = vector.broadcast %1 : f32 to vector<1x128xf32>
    %249 = arith.mulf %248, %243 : vector<1x128xf32>
    %250 = arith.addf %247, %249 : vector<1x128xf32>
    %251 = arith.addf %237, %238 : vector<1x128xf32>
    %252 = arith.addf %238, %250 : vector<1x128xf32>
    %253 = vector.broadcast %2 : f32 to vector<1x128xf32>
    %254 = arith.mulf %253, %237 : vector<1x128xf32>
    %255 = vector.broadcast %3 : f32 to vector<1x128xf32>
    %256 = arith.mulf %255, %243 : vector<1x128xf32>
    %257 = arith.addf %254, %256 : vector<1x128xf32>
    %258 = vector.broadcast %0 : f32 to vector<1x128xf32>
    %259 = arith.mulf %258, %251 : vector<1x128xf32>
    %260 = vector.broadcast %1 : f32 to vector<1x128xf32>
    %261 = arith.mulf %260, %257 : vector<1x128xf32>
    %262 = arith.addf %259, %261 : vector<1x128xf32>
    %263 = arith.addf %251, %252 : vector<1x128xf32>
    %264 = arith.addf %252, %262 : vector<1x128xf32>
    %265 = vector.broadcast %2 : f32 to vector<1x128xf32>
    %266 = arith.mulf %265, %251 : vector<1x128xf32>
    %267 = vector.broadcast %3 : f32 to vector<1x128xf32>
    %268 = arith.mulf %267, %257 : vector<1x128xf32>
    %269 = arith.addf %266, %268 : vector<1x128xf32>
    %270 = tpu.concatenate %237, %238, %237, %243, %251, %252, %251, %257 in 0 : vector<1x128xf32>, vector<1x128xf32>, vector<1x128xf32>, vector<1x128xf32>, vector<1x128xf32>, vector<1x128xf32>, vector<1x128xf32>, vector<1x128xf32> -> vector<8x128xf32>
    %c72 = arith.constant 72 : index
    %c0_22 = arith.constant 0 : index
    %271 = vector.load %arg3[%c72, %c0_22] : memref<96x128xf32, #tpu.memory_space<vmem>>, vector<8x128xf32>
    tpu.vector_store %arg3[%c72, %c0_22], %270 {strides = array<i32>} : memref<96x128xf32, #tpu.memory_space<vmem>>, vector<8x128xf32>,
    %272 = vector.broadcast %0 : f32 to vector<1x128xf32>
    %273 = arith.mulf %272, %263 : vector<1x128xf32>
    %274 = vector.broadcast %1 : f32 to vector<1x128xf32>
    %275 = arith.mulf %274, %269 : vector<1x128xf32>
    %276 = arith.addf %273, %275 : vector<1x128xf32>
    %277 = arith.addf %263, %264 : vector<1x128xf32>
    %278 = arith.addf %264, %276 : vector<1x128xf32>
    %279 = vector.broadcast %2 : f32 to vector<1x128xf32>
    %280 = arith.mulf %279, %263 : vector<1x128xf32>
    %281 = vector.broadcast %3 : f32 to vector<1x128xf32>
    %282 = arith.mulf %281, %269 : vector<1x128xf32>
    %283 = arith.addf %280, %282 : vector<1x128xf32>
    %284 = vector.broadcast %0 : f32 to vector<1x128xf32>
    %285 = arith.mulf %284, %277 : vector<1x128xf32>
    %286 = vector.broadcast %1 : f32 to vector<1x128xf32>
    %287 = arith.mulf %286, %283 : vector<1x128xf32>
    %288 = arith.addf %285, %287 : vector<1x128xf32>
    %289 = arith.addf %277, %278 : vector<1x128xf32>
    %290 = arith.addf %278, %288 : vector<1x128xf32>
    %291 = vector.broadcast %2 : f32 to vector<1x128xf32>
    %292 = arith.mulf %291, %277 : vector<1x128xf32>
    %293 = vector.broadcast %3 : f32 to vector<1x128xf32>
    %294 = arith.mulf %293, %283 : vector<1x128xf32>
    %295 = arith.addf %292, %294 : vector<1x128xf32>
    %296 = tpu.concatenate %263, %264, %263, %269, %277, %278, %277, %283 in 0 : vector<1x128xf32>, vector<1x128xf32>, vector<1x128xf32>, vector<1x128xf32>, vector<1x128xf32>, vector<1x128xf32>, vector<1x128xf32>, vector<1x128xf32> -> vector<8x128xf32>
    %c80 = arith.constant 80 : index
    %c0_23 = arith.constant 0 : index
    %297 = vector.load %arg3[%c80, %c0_23] : memref<96x128xf32, #tpu.memory_space<vmem>>, vector<8x128xf32>
    tpu.vector_store %arg3[%c80, %c0_23], %296 {strides = array<i32>} : memref<96x128xf32, #tpu.memory_space<vmem>>, vector<8x128xf32>,
    %298 = vector.broadcast %0 : f32 to vector<1x128xf32>
    %299 = arith.mulf %298, %289 : vector<1x128xf32>
    %300 = vector.broadcast %1 : f32 to vector<1x128xf32>
    %301 = arith.mulf %300, %295 : vector<1x128xf32>
    %302 = arith.addf %299, %301 : vector<1x128xf32>
    %303 = arith.addf %289, %290 : vector<1x128xf32>
    %304 = arith.addf %290, %302 : vector<1x128xf32>
    %305 = vector.broadcast %2 : f32 to vector<1x128xf32>
    %306 = arith.mulf %305, %289 : vector<1x128xf32>
    %307 = vector.broadcast %3 : f32 to vector<1x128xf32>
    %308 = arith.mulf %307, %295 : vector<1x128xf32>
    %309 = arith.addf %306, %308 : vector<1x128xf32>
    %310 = vector.broadcast %0 : f32 to vector<1x128xf32>
    %311 = arith.mulf %310, %303 : vector<1x128xf32>
    %312 = vector.broadcast %1 : f32 to vector<1x128xf32>
    %313 = arith.mulf %312, %309 : vector<1x128xf32>
    %314 = arith.addf %311, %313 : vector<1x128xf32>
    %315 = tpu.concatenate %289, %290, %289, %295, %303, %304, %303, %309 in 0 : vector<1x128xf32>, vector<1x128xf32>, vector<1x128xf32>, vector<1x128xf32>, vector<1x128xf32>, vector<1x128xf32>, vector<1x128xf32>, vector<1x128xf32> -> vector<8x128xf32>
    %c88 = arith.constant 88 : index
    %c0_24 = arith.constant 0 : index
    %316 = vector.load %arg3[%c88, %c0_24] : memref<96x128xf32, #tpu.memory_space<vmem>>, vector<8x128xf32>
    tpu.vector_store %arg3[%c88, %c0_24], %315 {strides = array<i32>} : memref<96x128xf32, #tpu.memory_space<vmem>>, vector<8x128xf32>,
    %317 = tpu.concatenate %224, %236, %250, %262, %276, %288, %302, %314 in 0 : vector<1x128xf32>, vector<1x128xf32>, vector<1x128xf32>, vector<1x128xf32>, vector<1x128xf32>, vector<1x128xf32>, vector<1x128xf32>, vector<1x128xf32> -> vector<8x128xf32>
    %c16_25 = arith.constant 16 : index
    %c0_26 = arith.constant 0 : index
    %318 = vector.load %arg4[%c16_25, %c0_26] : memref<24x128xf32, #tpu.memory_space<vmem>>, vector<8x128xf32>
    tpu.vector_store %arg4[%c16_25, %c0_26], %317 {strides = array<i32>} : memref<24x128xf32, #tpu.memory_space<vmem>>, vector<8x128xf32>,
    return
  }
  func.func @transform_0(%arg0: i32) -> i32 {
    %c0_i32 = arith.constant 0 : i32
    %c0_i32_0 = arith.constant 0 : i32
    return %c0_i32 : i32
  }
  func.func @transform_1(%arg0: i32) -> (i32, i32) {
    %c0_i32 = arith.constant 0 : i32
    %c0_i32_0 = arith.constant 0 : i32
    return %c0_i32, %arg0 : i32, i32
  }
  func.func @transform_2(%arg0: i32) -> (i32, i32) {
    %c0_i32 = arith.constant 0 : i32
    %c0_i32_0 = arith.constant 0 : i32
    return %c0_i32, %arg0 : i32, i32
  }
  func.func @transform_3(%arg0: i32) -> (i32, i32) {
    %c0_i32 = arith.constant 0 : i32
    %c0_i32_0 = arith.constant 0 : i32
    return %c0_i32, %arg0 : i32, i32
  }
}

</mosaic_0001>

<llo_original>
// kernel: tpu_custom_call.1
$region0: #{tpu_custom_call.1}
  #allocation0 [shape = 'u32[]', space=smem, size = 0x4, offset = 0x4, fixed_abs, tag = 'smem constant byte address 0x4 - core index']
  #allocation1 [shape = 'u32[144,128]{1,0:T(1,128)}', space=vmem, size = 0x12000, scoped, tag = 'internal scratch']
  %s0 = inlined_call_operand.hbm [shape: f32[4], index: 0, kind: input, shape index: {}]
  %s1 = inlined_call_operand.hbm [shape: f32[4,128], index: 1, kind: input, shape index: {}]
  %s2 = inlined_call_operand.hbm [shape: f32[96,128], index: 2, kind: output, shape index: {0}]
  %s3 = inlined_call_operand.hbm [shape: f32[24,128], index: 3, kind: output, shape index: {1}]
  %4 = xla_tuple %s2, %s3
  %s5 = sld [smem:[#allocation0]]
  $region34: #{tpu_custom_call.1} parent=0
    _
  %s7 = ssub.s32 1, %s5
  %s8 = scalar_select 0, %s7, %s5
  $region1: #{tpu_custom_call.1} parent=0
    #allocation2 [shape = 'u8[512]{0}', space=smem, size = 0x200, scoped, tag = 'input window, operand 0, single buffered']
    #allocation3 [shape = 's32[1]{0}', space=sflag, size = 0x4, scoped, tag = 'scoped memory for tpu_custom_call.1']
    #allocation4 [shape = 's32[1]{0}', space=sflag, size = 0x4, scoped, tag = 'scoped memory for tpu_custom_call.1']
    #allocation5 [shape = 's32[1]{0}', space=sflag, size = 0x4, scoped, tag = 'scoped memory for tpu_custom_call.1']
    #allocation6 [shape = 'u8[2048]{0}', space=vmem, size = 0x800, scoped, tag = 'input window, operand 1, single buffered']
    #allocation7 [shape = 'u8[49152]{0}', space=vmem, size = 0xc000, scoped, tag = 'output window, operand 0, single buffered']
    #allocation8 [shape = 'u8[12288]{0}', space=vmem, size = 0x3000, scoped, tag = 'output window, operand 1, single buffered']
    #allocation9 [shape = 's32[1]{0}', space=sflag, size = 0x4, scoped, tag = 'scoped memory for tpu_custom_call.1']
    %9 = vsyncpa [#allocation5], 0
    %10 = vsyncpa [#allocation3], 0
    %11 = vsyncpa [#allocation4], 0
    %12 = vsyncpa [#allocation9], 0
    // Predicated region
    $region2: #{tpu_custom_call.1} parent=1 // pred_check
      _
    $region3: #{tpu_custom_call.1} parent=1 // pred_check_branch
      %14 = sbr.rel (0) target = $region5
    $region4: #{tpu_custom_call.1} parent=1 // pred_region
      %s16 = ssub.s32 16, 16
      %17 = vsyncadd [#allocation5], %s16
      %20 = dma.hbm_to_smem %s0, 16, [#allocation2], [#allocation5]
    $region5: #{tpu_custom_call.1} parent=1 // pred_fallthru
      _
    // Predicated region
    $region6: #{tpu_custom_call.1} parent=1 // pred_check
      _
    $region7: #{tpu_custom_call.1} parent=1 // pred_check_branch
      %22 = sbr.rel (0) target = $region9
    $region8: #{tpu_custom_call.1} parent=1 // pred_region
      %s24 = ssub.s32 64, 64
      %25 = vsyncadd [#allocation3], %s24
      %s27 = sshll.u32 [#allocation6], 4
      %s28 = int_to_ptr.vmem [resolvable:$true] %s27
      %30 = dma.hbm_to_vmem [thread:$0]  %s1, 64, %s28, [#allocation3]
    $region9: #{tpu_custom_call.1} parent=1 // pred_fallthru
      _
    // Predicated region
    $region10: #{tpu_custom_call.1} parent=1 // pred_check
      _
    $region11: #{tpu_custom_call.1} parent=1 // pred_check_branch
      %32 = sbr.rel (0) target = $region13
    $region12: #{tpu_custom_call.1} parent=1 // pred_region
      %33 = dma.done [#allocation5], 16
    $region13: #{tpu_custom_call.1} parent=1 // pred_fallthru
      _
    // Predicated region
    $region14: #{tpu_custom_call.1} parent=1 // pred_check
      _
    $region15: #{tpu_custom_call.1} parent=1 // pred_check_branch
      %35 = sbr.rel (0) target = $region17
    $region16: #{tpu_custom_call.1} parent=1 // pred_region
      %36 = dma.done [#allocation3], 64
    $region17: #{tpu_custom_call.1} parent=1 // pred_fallthru
      _
    %37 = sfence
    %s38 = sld [smem:[#allocation2]]
    %s39 = sld [smem:[#allocation2 + $0x1]]
    %s40 = sld [smem:[#allocation2 + $0x2]]
    %s41 = sld [smem:[#allocation2 + $0x3]]
    %v42 = vld [vmem:[#allocation6] sm:$0x1]
    %v43 = vld [vmem:[#allocation6 + $0x1] sm:$0x1]
    %v44 = vld [vmem:[#allocation6 + $0x2] sm:$0x1]
    %v45 = vld [vmem:[#allocation6 + $0x3] sm:$0x1]
    %v46 = vstv %s38
    %v47 = vmul.f32 %v46, %v44
    %v48 = vstv %s39
    %v49 = vmul.f32 %v48, %v45
    %v50 = vadd.f32 %v47, %v49
    %v51 = vadd.f32 %v42, %v43
    %v52 = vadd.f32 %v43, %v50
    %v53 = vstv %s40
    %v54 = vmul.f32 %v53, %v44
    %v55 = vstv %s41
    %v56 = vmul.f32 %v55, %v45
    %v57 = vadd.f32 %v54, %v56
    %v58 = vmul.f32 %v46, %v51
    %v59 = vmul.f32 %v48, %v57
    %v60 = vadd.f32 %v58, %v59
    %v61 = vadd.f32 %v51, %v52
    %v62 = vadd.f32 %v52, %v60
    %v63 = vmul.f32 %v53, %v51
    %v64 = vmul.f32 %v55, %v57
    %v65 = vadd.f32 %v63, %v64
    %v67 = vrot.slane %v43, 7
    %v70 = vrot.slane %v44, 6
    %v73 = vrot.slane %v45, 5
    %v76 = vrot.slane %v51, 4
    %v79 = vrot.slane %v52, 3
    %v81 = vrot.slane %v51, 2
    %v84 = vrot.slane %v57, 1
    %vm86 = vcmask 1040384
    %v87 = vsel %vm86, %v42, %v67
    %vm88 = vcmask 1041408
    %v89 = vsel %vm88, %v87, %v70
    %vm90 = vcmask 1042432
    %v91 = vsel %vm90, %v89, %v73
    %vm92 = vcmask 1043456
    %v93 = vsel %vm92, %v91, %v76
    %vm94 = vcmask 1044480
    %v95 = vsel %vm94, %v93, %v79
    %vm96 = vcmask 1045504
    %v97 = vsel %vm96, %v95, %v81
    %vm98 = vcmask 1046528
    %v99 = vsel %vm98, %v97, %v84
    %100 = vst [vmem:[#allocation7] sm:$0xff] %v99
    %v101 = vmul.f32 %v46, %v61
    %v102 = vmul.f32 %v48, %v65
    %v103 = vadd.f32 %v101, %v102
    %v104 = vadd.f32 %v61, %v62
    %v105 = vadd.f32 %v62, %v103
    %v106 = vmul.f32 %v53, %v61
    %v107 = vmul.f32 %v55, %v65
    %v108 = vadd.f32 %v106, %v107
    %v109 = vmul.f32 %v46, %v104
    %v110 = vmul.f32 %v48, %v108
    %v111 = vadd.f32 %v109, %v110
    %v112 = vadd.f32 %v104, %v105
    %v113 = vadd.f32 %v105, %v111
    %v114 = vmul.f32 %v53, %v104
    %v115 = vmul.f32 %v55, %v108
    %v116 = vadd.f32 %v114, %v115
    %v118 = vrot.slane %v62, 7
    %v121 = vrot.slane %v61, 6
    %v124 = vrot.slane %v65, 5
    %v127 = vrot.slane %v104, 4
    %v130 = vrot.slane %v105, 3
    %v132 = vrot.slane %v104, 2
    %v135 = vrot.slane %v108, 1
    %v137 = vsel %vm86, %v61, %v118
    %v138 = vsel %vm88, %v137, %v121
    %v139 = vsel %vm90, %v138, %v124
    %v140 = vsel %vm92, %v139, %v127
    %v141 = vsel %vm94, %v140, %v130
    %v142 = vsel %vm96, %v141, %v132
    %v143 = vsel %vm98, %v142, %v135
    %144 = vst [vmem:[#allocation7 + $0x8] sm:$0xff] %v143
    %v145 = vmul.f32 %v46, %v112
    %v146 = vmul.f32 %v48, %v116
    %v147 = vadd.f32 %v145, %v146
    %v148 = vadd.f32 %v112, %v113
    %v149 = vadd.f32 %v113, %v147
    %v150 = vmul.f32 %v53, %v112
    %v151 = vmul.f32 %v55, %v116
    %v152 = vadd.f32 %v150, %v151
    %v153 = vmul.f32 %v46, %v148
    %v154 = vmul.f32 %v48, %v152
    %v155 = vadd.f32 %v153, %v154
    %v156 = vadd.f32 %v148, %v149
    %v157 = vadd.f32 %v149, %v155
    %v158 = vmul.f32 %v53, %v148
    %v159 = vmul.f32 %v55, %v152
    %v160 = vadd.f32 %v158, %v159
    %v162 = vrot.slane %v113, 7
    %v165 = vrot.slane %v112, 6
    %v168 = vrot.slane %v116, 5
    %v171 = vrot.slane %v148, 4
    %v174 = vrot.slane %v149, 3
    %v176 = vrot.slane %v148, 2
    %v179 = vrot.slane %v152, 1
    %v181 = vsel %vm86, %v112, %v162
    %v182 = vsel %vm88, %v181, %v165
    %v183 = vsel %vm90, %v182, %v168
    %v184 = vsel %vm92, %v183, %v171
    %v185 = vsel %vm94, %v184, %v174
    %v186 = vsel %vm96, %v185, %v176
    %v187 = vsel %vm98, %v186, %v179
    %188 = vst [vmem:[#allocation7 + $0x10] sm:$0xff] %v187
    %v189 = vmul.f32 %v46, %v156
    %v190 = vmul.f32 %v48, %v160
    %v191 = vadd.f32 %v189, %v190
    %v192 = vadd.f32 %v156, %v157
    %v193 = vadd.f32 %v157, %v191
    %v194 = vmul.f32 %v53, %v156
    %v195 = vmul.f32 %v55, %v160
    %v196 = vadd.f32 %v194, %v195
    %v197 = vmul.f32 %v46, %v192
    %v198 = vmul.f32 %v48, %v196
    %v199 = vadd.f32 %v197, %v198
    %v200 = vadd.f32 %v192, %v193
    %v201 = vadd.f32 %v193, %v199
    %v202 = vmul.f32 %v53, %v192
    %v203 = vmul.f32 %v55, %v196
    %v204 = vadd.f32 %v202, %v203
    %v206 = vrot.slane %v157, 7
    %v209 = vrot.slane %v156, 6
    %v212 = vrot.slane %v160, 5
    %v215 = vrot.slane %v192, 4
    %v218 = vrot.slane %v193, 3
    %v220 = vrot.slane %v192, 2
    %v223 = vrot.slane %v196, 1
    %v225 = vsel %vm86, %v156, %v206
    %v226 = vsel %vm88, %v225, %v209
    %v227 = vsel %vm90, %v226, %v212
    %v228 = vsel %vm92, %v227, %v215
    %v229 = vsel %vm94, %v228, %v218
    %v230 = vsel %vm96, %v229, %v220
    %v231 = vsel %vm98, %v230, %v223
    %232 = vst [vmem:[#allocation7 + $0x18] sm:$0xff] %v231
    %v234 = vrot.slane %v60, 7
    %v237 = vrot.slane %v103, 6
    %v240 = vrot.slane %v111, 5
    %v243 = vrot.slane %v147, 4
    %v246 = vrot.slane %v155, 3
    %v249 = vrot.slane %v191, 2
    %v252 = vrot.slane %v199, 1
    %v254 = vsel %vm86, %v50, %v234
    %v255 = vsel %vm88, %v254, %v237
    %v256 = vsel %vm90, %v255, %v240
    %v257 = vsel %vm92, %v256, %v243
    %v258 = vsel %vm94, %v257, %v246
    %v259 = vsel %vm96, %v258, %v249
    %v260 = vsel %vm98, %v259, %v252
    %261 = vst [vmem:[#allocation8] sm:$0xff] %v260
    %v262 = vmul.f32 %v46, %v200
    %v263 = vmul.f32 %v48, %v204
    %v264 = vadd.f32 %v262, %v263
    %v265 = vadd.f32 %v200, %v201
    %v266 = vadd.f32 %v201, %v264
    %v267 = vmul.f32 %v53, %v200
    %v268 = vmul.f32 %v55, %v204
    %v269 = vadd.f32 %v267, %v268
    %v270 = vmul.f32 %v46, %v265
    %v271 = vmul.f32 %v48, %v269
    %v272 = vadd.f32 %v270, %v271
    %v273 = vadd.f32 %v265, %v266
    %v274 = vadd.f32 %v266, %v272
    %v275 = vmul.f32 %v53, %v265
    %v276 = vmul.f32 %v55, %v269
    %v277 = vadd.f32 %v275, %v276
    %v279 = vrot.slane %v201, 7
    %v282 = vrot.slane %v200, 6
    %v285 = vrot.slane %v204, 5
    %v288 = vrot.slane %v265, 4
    %v291 = vrot.slane %v266, 3
    %v293 = vrot.slane %v265, 2
    %v296 = vrot.slane %v269, 1
    %v298 = vsel %vm86, %v200, %v279
    %v299 = vsel %vm88, %v298, %v282
    %v300 = vsel %vm90, %v299, %v285
    %v301 = vsel %vm92, %v300, %v288
    %v302 = vsel %vm94, %v301, %v291
    %v303 = vsel %vm96, %v302, %v293
    %v304 = vsel %vm98, %v303, %v296
    %305 = vst [vmem:[#allocation7 + $0x20] sm:$0xff] %v304
    %v306 = vmul.f32 %v46, %v273
    %v307 = vmul.f32 %v48, %v277
    %v308 = vadd.f32 %v306, %v307
    %v309 = vadd.f32 %v273, %v274
    %v310 = vadd.f32 %v274, %v308
    %v311 = vmul.f32 %v53, %v273
    %v312 = vmul.f32 %v55, %v277
    %v313 = vadd.f32 %v311, %v312
    %v314 = vmul.f32 %v46, %v309
    %v315 = vmul.f32 %v48, %v313
    %v316 = vadd.f32 %v314, %v315
    %v317 = vadd.f32 %v309, %v310
    %v318 = vadd.f32 %v310, %v316
    %v319 = vmul.f32 %v53, %v309
    %v320 = vmul.f32 %v55, %v313
    %v321 = vadd.f32 %v319, %v320
    %v323 = vrot.slane %v274, 7
    %v326 = vrot.slane %v273, 6
    %v329 = vrot.slane %v277, 5
    %v332 = vrot.slane %v309, 4
    %v335 = vrot.slane %v310, 3
    %v337 = vrot.slane %v309, 2
    %v340 = vrot.slane %v313, 1
    %v342 = vsel %vm86, %v273, %v323
    %v343 = vsel %vm88, %v342, %v326
    %v344 = vsel %vm90, %v343, %v329
    %v345 = vsel %vm92, %v344, %v332
    %v346 = vsel %vm94, %v345, %v335
    %v347 = vsel %vm96, %v346, %v337
    %v348 = vsel %vm98, %v347, %v340
    %349 = vst [vmem:[#allocation7 + $0x28] sm:$0xff] %v348
    %v350 = vmul.f32 %v46, %v317
    %v351 = vmul.f32 %v48, %v321
    %v352 = vadd.f32 %v350, %v351
    %v353 = vadd.f32 %v317, %v318
    %v354 = vadd.f32 %v318, %v352
    %v355 = vmul.f32 %v53, %v317
    %v356 = vmul.f32 %v55, %v321
    %v357 = vadd.f32 %v355, %v356
    %v358 = vmul.f32 %v46, %v353
    %v359 = vmul.f32 %v48, %v357
    %v360 = vadd.f32 %v358, %v359
    %v361 = vadd.f32 %v353, %v354
    %v362 = vadd.f32 %v354, %v360
    %v363 = vmul.f32 %v53, %v353
    %v364 = vmul.f32 %v55, %v357
    %v365 = vadd.f32 %v363, %v364
    %v367 = vrot.slane %v318, 7
    %v370 = vrot.slane %v317, 6
    %v373 = vrot.slane %v321, 5
    %v376 = vrot.slane %v353, 4
    %v379 = vrot.slane %v354, 3
    %v381 = vrot.slane %v353, 2
    %v384 = vrot.slane %v357, 1
    %v386 = vsel %vm86, %v317, %v367
    %v387 = vsel %vm88, %v386, %v370
    %v388 = vsel %vm90, %v387, %v373
    %v389 = vsel %vm92, %v388, %v376
    %v390 = vsel %vm94, %v389, %v379
    %v391 = vsel %vm96, %v390, %v381
    %v392 = vsel %vm98, %v391, %v384
    %393 = vst [vmem:[#allocation7 + $0x30] sm:$0xff] %v392
    %v394 = vmul.f32 %v46, %v361
    %v395 = vmul.f32 %v48, %v365
    %v396 = vadd.f32 %v394, %v395
    %v397 = vadd.f32 %v361, %v362
    %v398 = vadd.f32 %v362, %v396
    %v399 = vmul.f32 %v53, %v361
    %v400 = vmul.f32 %v55, %v365
    %v401 = vadd.f32 %v399, %v400
    %v402 = vmul.f32 %v46, %v397
    %v403 = vmul.f32 %v48, %v401
    %v404 = vadd.f32 %v402, %v403
    %v405 = vadd.f32 %v397, %v398
    %v406 = vadd.f32 %v398, %v404
    %v407 = vmul.f32 %v53, %v397
    %v408 = vmul.f32 %v55, %v401
    %v409 = vadd.f32 %v407, %v408
    %v411 = vrot.slane %v362, 7
    %v414 = vrot.slane %v361, 6
    %v417 = vrot.slane %v365, 5
    %v420 = vrot.slane %v397, 4
    %v423 = vrot.slane %v398, 3
    %v425 = vrot.slane %v397, 2
    %v428 = vrot.slane %v401, 1
    %v430 = vsel %vm86, %v361, %v411
    %v431 = vsel %vm88, %v430, %v414
    %v432 = vsel %vm90, %v431, %v417
    %v433 = vsel %vm92, %v432, %v420
    %v434 = vsel %vm94, %v433, %v423
    %v435 = vsel %vm96, %v434, %v425
    %v436 = vsel %vm98, %v435, %v428
    %437 = vst [vmem:[#allocation7 + $0x38] sm:$0xff] %v436
    %v439 = vrot.slane %v272, 7
    %v442 = vrot.slane %v308, 6
    %v445 = vrot.slane %v316, 5
    %v448 = vrot.slane %v352, 4
    %v451 = vrot.slane %v360, 3
    %v454 = vrot.slane %v396, 2
    %v457 = vrot.slane %v404, 1
    %v459 = vsel %vm86, %v264, %v439
    %v460 = vsel %vm88, %v459, %v442
    %v461 = vsel %vm90, %v460, %v445
    %v462 = vsel %vm92, %v461, %v448
    %v463 = vsel %vm94, %v462, %v451
    %v464 = vsel %vm96, %v463, %v454
    %v465 = vsel %vm98, %v464, %v457
    %466 = vst [vmem:[#allocation8 + $0x8] sm:$0xff] %v465
    %v467 = vmul.f32 %v46, %v405
    %v468 = vmul.f32 %v48, %v409
    %v469 = vadd.f32 %v467, %v468
    %v470 = vadd.f32 %v405, %v406
    %v471 = vadd.f32 %v406, %v469
    %v472 = vmul.f32 %v53, %v405
    %v473 = vmul.f32 %v55, %v409
    %v474 = vadd.f32 %v472, %v473
    %v475 = vmul.f32 %v46, %v470
    %v476 = vmul.f32 %v48, %v474
    %v477 = vadd.f32 %v475, %v476
    %v478 = vadd.f32 %v470, %v471
    %v479 = vadd.f32 %v471, %v477
    %v480 = vmul.f32 %v53, %v470
    %v481 = vmul.f32 %v55, %v474
    %v482 = vadd.f32 %v480, %v481
    %v484 = vrot.slane %v406, 7
    %v487 = vrot.slane %v405, 6
    %v490 = vrot.slane %v409, 5
    %v493 = vrot.slane %v470, 4
    %v496 = vrot.slane %v471, 3
    %v498 = vrot.slane %v470, 2
    %v501 = vrot.slane %v474, 1
    %v503 = vsel %vm86, %v405, %v484
    %v504 = vsel %vm88, %v503, %v487
    %v505 = vsel %vm90, %v504, %v490
    %v506 = vsel %vm92, %v505, %v493
    %v507 = vsel %vm94, %v506, %v496
    %v508 = vsel %vm96, %v507, %v498
    %v509 = vsel %vm98, %v508, %v501
    %510 = vst [vmem:[#allocation7 + $0x40] sm:$0xff] %v509
    %v511 = vmul.f32 %v46, %v478
    %v512 = vmul.f32 %v48, %v482
    %v513 = vadd.f32 %v511, %v512
    %v514 = vadd.f32 %v478, %v479
    %v515 = vadd.f32 %v479, %v513
    %v516 = vmul.f32 %v53, %v478
    %v517 = vmul.f32 %v55, %v482
    %v518 = vadd.f32 %v516, %v517
    %v519 = vmul.f32 %v46, %v514
    %v520 = vmul.f32 %v48, %v518
    %v521 = vadd.f32 %v519, %v520
    %v522 = vadd.f32 %v514, %v515
    %v523 = vadd.f32 %v515, %v521
    %v524 = vmul.f32 %v53, %v514
    %v525 = vmul.f32 %v55, %v518
    %v526 = vadd.f32 %v524, %v525
    %v528 = vrot.slane %v479, 7
    %v531 = vrot.slane %v478, 6
    %v534 = vrot.slane %v482, 5
    %v537 = vrot.slane %v514, 4
    %v540 = vrot.slane %v515, 3
    %v542 = vrot.slane %v514, 2
    %v545 = vrot.slane %v518, 1
    %v547 = vsel %vm86, %v478, %v528
    %v548 = vsel %vm88, %v547, %v531
    %v549 = vsel %vm90, %v548, %v534
    %v550 = vsel %vm92, %v549, %v537
    %v551 = vsel %vm94, %v550, %v540
    %v552 = vsel %vm96, %v551, %v542
    %v553 = vsel %vm98, %v552, %v545
    %554 = vst [vmem:[#allocation7 + $0x48] sm:$0xff] %v553
    %v555 = vmul.f32 %v46, %v522
    %v556 = vmul.f32 %v48, %v526
    %v557 = vadd.f32 %v555, %v556
    %v558 = vadd.f32 %v522, %v523
    %v559 = vadd.f32 %v523, %v557
    %v560 = vmul.f32 %v53, %v522
    %v561 = vmul.f32 %v55, %v526
    %v562 = vadd.f32 %v560, %v561
    %v563 = vmul.f32 %v46, %v558
    %v564 = vmul.f32 %v48, %v562
    %v565 = vadd.f32 %v563, %v564
    %v566 = vadd.f32 %v558, %v559
    %v567 = vadd.f32 %v559, %v565
    %v568 = vmul.f32 %v53, %v558
    %v569 = vmul.f32 %v55, %v562
    %v570 = vadd.f32 %v568, %v569
    %v572 = vrot.slane %v523, 7
    %v575 = vrot.slane %v522, 6
    %v578 = vrot.slane %v526, 5
    %v581 = vrot.slane %v558, 4
    %v584 = vrot.slane %v559, 3
    %v586 = vrot.slane %v558, 2
    %v589 = vrot.slane %v562, 1
    %v591 = vsel %vm86, %v522, %v572
    %v592 = vsel %vm88, %v591, %v575
    %v593 = vsel %vm90, %v592, %v578
    %v594 = vsel %vm92, %v593, %v581
    %v595 = vsel %vm94, %v594, %v584
    %v596 = vsel %vm96, %v595, %v586
    %v597 = vsel %vm98, %v596, %v589
    %598 = vst [vmem:[#allocation7 + $0x50] sm:$0xff] %v597
    %v599 = vmul.f32 %v46, %v566
    %v600 = vmul.f32 %v48, %v570
    %v601 = vadd.f32 %v599, %v600
    %v602 = vadd.f32 %v566, %v567
    %v603 = vadd.f32 %v567, %v601
    %v604 = vmul.f32 %v53, %v566
    %v605 = vmul.f32 %v55, %v570
    %v606 = vadd.f32 %v604, %v605
    %v607 = vmul.f32 %v46, %v602
    %v608 = vmul.f32 %v48, %v606
    %v609 = vadd.f32 %v607, %v608
    %v611 = vrot.slane %v567, 7
    %v614 = vrot.slane %v566, 6
    %v617 = vrot.slane %v570, 5
    %v620 = vrot.slane %v602, 4
    %v623 = vrot.slane %v603, 3
    %v625 = vrot.slane %v602, 2
    %v628 = vrot.slane %v606, 1
    %v630 = vsel %vm86, %v566, %v611
    %v631 = vsel %vm88, %v630, %v614
    %v632 = vsel %vm90, %v631, %v617
    %v633 = vsel %vm92, %v632, %v620
    %v634 = vsel %vm94, %v633, %v623
    %v635 = vsel %vm96, %v634, %v625
    %v636 = vsel %vm98, %v635, %v628
    %637 = vst [vmem:[#allocation7 + $0x58] sm:$0xff] %v636
    %v639 = vrot.slane %v477, 7
    %v642 = vrot.slane %v513, 6
    %v645 = vrot.slane %v521, 5
    %v648 = vrot.slane %v557, 4
    %v651 = vrot.slane %v565, 3
    %v654 = vrot.slane %v601, 2
    %v657 = vrot.slane %v609, 1
    %v659 = vsel %vm86, %v469, %v639
    %v660 = vsel %vm88, %v659, %v642
    %v661 = vsel %vm90, %v660, %v645
    %v662 = vsel %vm92, %v661, %v648
    %v663 = vsel %vm94, %v662, %v651
    %v664 = vsel %vm96, %v663, %v654
    %v665 = vsel %vm98, %v664, %v657
    %666 = vst [vmem:[#allocation8 + $0x10] sm:$0xff] %v665
    // Predicated region
    $region18: #{tpu_custom_call.1} parent=1 // pred_check
      _
    $region19: #{tpu_custom_call.1} parent=1 // pred_check_branch
      %668 = sbr.rel (0) target = $region21
    $region20: #{tpu_custom_call.1} parent=1 // pred_region
      %s670 = ssub.s32 1536, 1536
      %671 = vsyncadd [#allocation4], %s670
      %s672 = sshll.u32 [#allocation7], 4
      %s673 = int_to_ptr.vmem [resolvable:$true] %s672
      %678 = dma.vmem_to_hbm [thread:$0]  %s673, 1536, %s2, [#allocation4], 128, 128, 8
    $region21: #{tpu_custom_call.1} parent=1 // pred_fallthru
      _
    // Predicated region
    $region22: #{tpu_custom_call.1} parent=1 // pred_check
      _
    $region23: #{tpu_custom_call.1} parent=1 // pred_check_branch
      %680 = sbr.rel (0) target = $region25
    $region24: #{tpu_custom_call.1} parent=1 // pred_region
      %s682 = ssub.s32 384, 384
      %683 = vsyncadd [#allocation9], %s682
      %s684 = sshll.u32 [#allocation8], 4
      %s685 = int_to_ptr.vmem [resolvable:$true] %s684
      %690 = dma.vmem_to_hbm [thread:$0]  %s685, 384, %s3, [#allocation9], 128, 128, 8
    $region25: #{tpu_custom_call.1} parent=1 // pred_fallthru
      _
    // Predicated region
    $region26: #{tpu_custom_call.1} parent=1 // pred_check
      _
    $region27: #{tpu_custom_call.1} parent=1 // pred_check_branch
      %692 = sbr.rel (0) target = $region29
    $region28: #{tpu_custom_call.1} parent=1 // pred_region
      %693 = dma.done [#allocation4], 1536
    $region29: #{tpu_custom_call.1} parent=1 // pred_fallthru
      _
    // Predicated region
    $region30: #{tpu_custom_call.1} parent=1 // pred_check
      _
    $region31: #{tpu_custom_call.1} parent=1 // pred_check_branch
      %695 = sbr.rel (0) target = $region33
    $region32: #{tpu_custom_call.1} parent=1 // pred_region
      %696 = dma.done [#allocation9], 384
    $region33: #{tpu_custom_call.1} parent=1 // pred_fallthru
      _
    %697 = vsyncpa [#allocation3], 1
    %698 = vsyncpa [#allocation4], 1
    %699 = vsyncpa [#allocation9], 1
    %700 = vsyncpa [#allocation5], 1

</llo_original>
